<compile_context>
chip_gen: v6e
topology: v6e:2x2x1
jax: 0.10.0
libtpu: 0.0.40
codegen_flags: <defaults>
</compile_context>

<pallas_src>
import functools

import jax
import jax.numpy as jnp
from jax.experimental import pallas as pl
from jax.experimental.pallas import tpu as pltpu


def _reclassify_global_kernel(cls_ref, ws_ref, bs_ref, we_ref, be_ref, oh_ref,
                              score_ref, loss_ref, *, groups_per_block,
                              group_size):
    """One block of TB listwise groups per grid step.

    cls_ref:   (TB*G, H)  dtype  VMEM  -- CLS reps of this block of groups
    ws_ref:    (H, H)     dtype  VMEM  (start.weight, PyTorch [out, in], resident)
    bs_ref:    (1, H)     dtype  VMEM  (start.bias)
    we_ref:    (H, H)     dtype  VMEM  (end.weight, resident)
    be_ref:    (1, H)     dtype  VMEM  (end.bias)
    oh_ref:    (TB, G)    f32    VMEM  (one-hot CE targets per group)
    score_ref: (TB, G)    f32    VMEM  (output, softmax(logits_sum1) per group)
    loss_ref:  (TB, 1)    f32    VMEM  (output, per-group loss1 + loss2)
    """
    TB, G = groups_per_block, group_size

    x = cls_ref[...]                                       # (TB*G, H), input dtype

    # Linear heads: y = x @ W^T + bias.  W is PyTorch [out, in]; contract the
    # "in" dims directly (no transposed copy of W is ever materialized); f32
    # accumulation on the MXU via preferred_element_type.
    dims = (((1,), (1,)), ((), ()))
    rep_start = jax.lax.dot_general(
        x, ws_ref[...], dims, preferred_element_type=jnp.float32) + bs_ref[...]
    rep_end = jax.lax.dot_general(
        x, we_ref[...], dims, preferred_element_type=jnp.float32) + be_ref[...]

    rs = rep_start.reshape(TB, G, -1)                      # (TB, G, H) f32
    re = rep_end.reshape(TB, G, -1)                        # (TB, G, H) f32

    # Pairwise in-group scores: logits[b, m, n] = <rep_start[b,m], rep_end[b,n]>.
    logits = jnp.einsum('bmd,bnd->bmn', rs, re,
                        preferred_element_type=jnp.float32)        # (TB, G, G)

    # logits - diag_embed(diagonal)  ==  zero out the diagonal.
    row = jax.lax.broadcasted_iota(jnp.int32, (TB, G, G), 1)
    col = jax.lax.broadcasted_iota(jnp.int32, (TB, G, G), 2)
    logits_mtx = jnp.where(row == col, 0.0, logits)

    sum1 = jnp.sum(logits_mtx, axis=1)                     # (TB, G)  sum over m
    sum2 = jnp.sum(logits_mtx, axis=2)                     # (TB, G)  sum over n

    # score = softmax(logits_sum1) along the group dimension.
    m1 = jnp.max(sum1, axis=-1, keepdims=True)             # (TB, 1)
    e1 = jnp.exp(sum1 - m1)                                # (TB, G)
    z1 = jnp.sum(e1, axis=-1, keepdims=True)               # (TB, 1)
    score_ref[...] = (e1 / z1).astype(score_ref.dtype)

    # Cross-entropies in stable log-softmax form; target pick is a vectorized
    # one-hot multiply-reduce.
    # TODO(synk): nn.CrossEntropyLoss's ignore_index=-100 path is not handled;
    # targets are assumed to be valid class indices in [0, G).
    onehot = oh_ref[...]                                   # (TB, G) f32

    lse1 = m1 + jnp.log(z1)                                # (TB, 1)
    picked1 = jnp.sum(onehot * sum1, axis=-1, keepdims=True)
    loss1 = lse1 - picked1                                 # (TB, 1)

    neg2 = -sum2                                           # (TB, G)
    m2 = jnp.max(neg2, axis=-1, keepdims=True)
    z2 = jnp.sum(jnp.exp(neg2 - m2), axis=-1, keepdims=True)
    lse2 = m2 + jnp.log(z2)
    picked2 = jnp.sum(onehot * neg2, axis=-1, keepdims=True)
    loss2 = lse2 - picked2                                 # (TB, 1)

    loss_ref[...] = (loss1 + loss2).astype(loss_ref.dtype)


def reclassify_global_forward(last_hidden_state, w_start, b_start, w_end, b_end,
                              labels, train_group_size,
                              vmem_block_budget_bytes=4 * 1024 * 1024):
    """Pallas-backed equivalent of ReClassifyGlobal.forward (training branch).

    last_hidden_state: (N, S, H)  -- stands in for hf_model(...).last_hidden_state
                                     (N = per_device_batch * train_group_size)
    w_start, w_end:    (H, H)     -- nn.Linear(H, H).weight (PyTorch [out, in])
    b_start, b_end:    (H,)       -- nn.Linear biases
    labels:            (N,)      -- integer targets; tgt = labels.view(B, G)[:, 0]
    Returns (score: (B, G) f32 softmax scores, loss: scalar f32).
    """
    N, S, H = last_hidden_state.shape
    G = int(train_group_size)
    B = N // G

    # CLS slice before the kernel: only N*H elements ever reach VMEM, not N*S*H.
    cls2d = last_hidden_state[:, 0, :]                     # (N, H), input dtype
    bs2 = b_start.reshape(1, H)
    be2 = b_end.reshape(1, H)

    tgt = labels.reshape(B, G)[:, 0].astype(jnp.int32)     # (B,)
    onehot = jax.nn.one_hot(tgt, G, dtype=jnp.float32)     # (B, G), tiny

    itemsize = jnp.dtype(last_hidden_state.dtype).itemsize

    # Choose how many groups each grid step processes.  Per-group working set:
    # CLS tile + f32 rep_start/rep_end + (G, G) f32 logits + small.
    per_group = G * H * (itemsize + 2 * 4) + G * G * 4 + 8 * G
    tb_fit = max(1, int(vmem_block_budget_bytes // per_group))
    if tb_fit >= B:
        TB, B_pad = B, B                                   # whole batch per step
    else:
        TB = max(8, (tb_fit // 8) * 8)                     # keep 2nd-minor 8-aligned
        B_pad = ((B + TB - 1) // TB) * TB
        pad = B_pad - B
        if pad:
            cls2d = jnp.pad(cls2d, ((0, pad * G), (0, 0)))
            onehot = jnp.pad(onehot, ((0, pad), (0, 0)))
    num_blocks = B_pad // TB

    grid_spec = pltpu.PrefetchScalarGridSpec(
        num_scalar_prefetch=0,
        grid=(num_blocks,),
        in_specs=[
            pl.BlockSpec((TB * G, H), lambda i: (i, 0)),   # CLS rows of this block
            pl.BlockSpec((H, H), lambda i: (0, 0)),        # start.weight (resident)
            pl.BlockSpec((1, H), lambda i: (0, 0)),        # start.bias
            pl.BlockSpec((H, H), lambda i: (0, 0)),        # end.weight (resident)
            pl.BlockSpec((1, H), lambda i: (0, 0)),        # end.bias
            pl.BlockSpec((TB, G), lambda i: (i, 0)),       # one-hot targets
        ],
        out_specs=[
            pl.BlockSpec((TB, G), lambda i: (i, 0)),       # per-group softmax score
            pl.BlockSpec((TB, 1), lambda i: (i, 0)),       # per-group loss1 + loss2
        ],
    )

    w_itemsize = jnp.dtype(w_start.dtype).itemsize
    flops = int(B * (4 * G * H * H + 2 * G * G * H))
    transcendentals = int(B * (2 * G + 2))
    bytes_accessed = int(B_pad * G * H * itemsize
                         + 2 * H * H * w_itemsize
                         + 2 * H * jnp.dtype(b_start.dtype).itemsize
                         + B_pad * G * 4            # one-hot
                         + B_pad * G * 4            # score
                         + B_pad * 4)               # loss

    kernel = functools.partial(_reclassify_global_kernel,
                               groups_per_block=TB, group_size=G)

    score_p, loss_p = pl.pallas_call(
        kernel,
        out_shape=(
            jax.ShapeDtypeStruct((B_pad, G), jnp.float32),
            jax.ShapeDtypeStruct((B_pad, 1), jnp.float32),
        ),
        grid_spec=grid_spec,
        compiler_params=pltpu.CompilerParams(
            # No revisited output block -> blocks of groups are independent.
            dimension_semantics=("parallel",),
            vmem_limit_bytes=32 * 1024 * 1024,
        ),
        cost_estimate=pl.CostEstimate(
            flops=flops,
            transcendentals=transcendentals,
            bytes_accessed=bytes_accessed,
        ),
    )(cls2d, w_start, bs2, w_end, be2, onehot)

    score = score_p[:B]
    loss = jnp.mean(loss_p[:B, 0])                         # mean over the B groups
    return score, loss


def _reference_forward(last_hidden_state, w_start, b_start, w_end, b_end,
                       labels, train_group_size):
    """Pure-JAX reference mirroring the PyTorch semantics."""
    G = int(train_group_size)
    reps = last_hidden_state[:, 0, :]
    N, H = reps.shape
    B = N // G
    rep_start = (reps @ w_start.T + b_start).reshape(B, G, H)
    rep_end = (reps @ w_end.T + b_end).reshape(B, G, H)
    logits = jnp.einsum('bmd,bnd->bmn', rep_start, rep_end)
    eye = jnp.eye(G, dtype=bool)[None]
    logits_mtx = jnp.where(eye, 0.0, logits)
    sum1 = jnp.sum(logits_mtx, axis=1)                     # (B, G)
    sum2 = jnp.sum(logits_mtx, axis=2)                     # (B, G)
    score = jax.nn.softmax(sum1, axis=-1)                  # F.softmax implicit dim
    tgt = labels.reshape(B, G)[:, 0].astype(jnp.int32)
    logp1 = jax.nn.log_softmax(sum1, axis=-1)
    loss1 = -jnp.mean(jnp.take_along_axis(logp1, tgt[:, None], axis=-1))
    logp2 = jax.nn.log_softmax(-sum2, axis=-1)
    loss2 = -jnp.mean(jnp.take_along_axis(logp2, tgt[:, None], axis=-1))
    return score, loss1 + loss2


if __name__ == "__main__":
    # Small, module-consistent shapes:
    #   per_device_train_batch_size B=2, train_group_size G=8,
    #   seq S=8, hidden_size H=32  ->  N = B*G = 16 sequences.
    B, G, S, H = 2, 8, 8, 32
    N = B * G

    key = jax.random.PRNGKey(0)
    k_reps, k_ws, k_bs, k_we, k_be, k_lbl = jax.random.split(key, 6)

    # Stands in for hf_model(**batch).last_hidden_state.
    # TODO(synk): the HF transformer backbone is opaque / not translated; its
    # output (last_hidden_state) is taken as the kernel input.
    last_hidden_state = jax.random.normal(k_reps, (N, S, H), dtype=jnp.float32)

    bound = 1.0 / (H ** 0.5)
    w_start = jax.random.uniform(k_ws, (H, H), minval=-bound, maxval=bound,
                                 dtype=jnp.float32)
    b_start = jax.random.uniform(k_bs, (H,), minval=-bound, maxval=bound,
                                 dtype=jnp.float32)
    w_end = jax.random.uniform(k_we, (H, H), minval=-bound, maxval=bound,
                               dtype=jnp.float32)
    b_end = jax.random.uniform(k_be, (H,), minval=-bound, maxval=bound,
                               dtype=jnp.float32)

    labels = jax.random.randint(k_lbl, (N,), 0, G, dtype=jnp.int32)

    score, loss = reclassify_global_forward(
        last_hidden_state, w_start, b_start, w_end, b_end, labels, G)
    jax.block_until_ready((score, loss))

    ref_score, ref_loss = _reference_forward(
        last_hidden_state, w_start, b_start, w_end, b_end, labels, G)

    assert score.shape == (B, G)
    assert jnp.allclose(score, ref_score, atol=1e-4, rtol=1e-4)
    assert jnp.allclose(loss, ref_loss, atol=1e-4, rtol=1e-4)

    print("KERNEL_OK")
</pallas_src>

<mosaic_0001>
module attributes {stable_mosaic.version = 11 : i64} {
  func.func @_reclassify_global_kernel(%arg0: i32, %arg1: memref<16x32xf32, #tpu.memory_space<vmem>>, %arg2: memref<32x32xf32, #tpu.memory_space<vmem>>, %arg3: memref<1x32xf32, #tpu.memory_space<vmem>>, %arg4: memref<32x32xf32, #tpu.memory_space<vmem>>, %arg5: memref<1x32xf32, #tpu.memory_space<vmem>>, %arg6: memref<2x8xf32, #tpu.memory_space<vmem>>, %arg7: memref<2x8xf32, #tpu.memory_space<vmem>>, %arg8: memref<2x1xf32, #tpu.memory_space<vmem>>) attributes {dimension_semantics = [#tpu.dimension_semantics<parallel>], iteration_bounds = array<i64: 1>, scalar_prefetch = 0 : i64, scratch_operands = 0 : i64, tpu.core_type = #tpu.core_type<tc>, window_params = [{transform_indices = @transform_0, window_bounds = array<i64: 16, 32>}, {pipeline_mode = #tpu.pipeline_mode<synchronous>, transform_indices = @transform_1, window_bounds = array<i64: 32, 32>}, {pipeline_mode = #tpu.pipeline_mode<synchronous>, transform_indices = @transform_2, window_bounds = array<i64: 1, 32>}, {pipeline_mode = #tpu.pipeline_mode<synchronous>, transform_indices = @transform_3, window_bounds = array<i64: 32, 32>}, {pipeline_mode = #tpu.pipeline_mode<synchronous>, transform_indices = @transform_4, window_bounds = array<i64: 1, 32>}, {transform_indices = @transform_5, window_bounds = array<i64: 2, 8>}, {transform_indices = @transform_6, window_bounds = array<i64: 2, 8>}, {transform_indices = @transform_7, window_bounds = array<i64: 2, 1>}]} {
    %c0 = arith.constant 0 : index
    %c0_0 = arith.constant 0 : index
    %0 = vector.load %arg1[%c0, %c0_0] : memref<16x32xf32, #tpu.memory_space<vmem>>, vector<16x32xf32>
    %c0_1 = arith.constant 0 : index
    %c0_2 = arith.constant 0 : index
    %1 = vector.load %arg2[%c0_1, %c0_2] : memref<32x32xf32, #tpu.memory_space<vmem>>, vector<32x32xf32>
    %cst = arith.constant dense<0.000000e+00> : vector<16x32xf32>
    %2 = tpu.matmul %0, %1, %cst {dimension_numbers = #tpu.dot_dimension_numbers<[1], [1], [0], [0], [0, 0, 1, 0], [], []>} : vector<16x32xf32>, vector<32x32xf32>, vector<16x32xf32> -> vector<16x32xf32>
    %c0_3 = arith.constant 0 : index
    %c0_4 = arith.constant 0 : index
    %3 = vector.load %arg3[%c0_3, %c0_4] : memref<1x32xf32, #tpu.memory_space<vmem>>, vector<1x32xf32>
    %4 = vector.broadcast %3 : vector<1x32xf32> to vector<16x32xf32>
    %5 = arith.addf %2, %4 : vector<16x32xf32>
    %c0_5 = arith.constant 0 : index
    %c0_6 = arith.constant 0 : index
    %6 = vector.load %arg4[%c0_5, %c0_6] : memref<32x32xf32, #tpu.memory_space<vmem>>, vector<32x32xf32>
    %cst_7 = arith.constant dense<0.000000e+00> : vector<16x32xf32>
    %7 = tpu.matmul %0, %6, %cst_7 {dimension_numbers = #tpu.dot_dimension_numbers<[1], [1], [0], [0], [0, 0, 1, 0], [], []>} : vector<16x32xf32>, vector<32x32xf32>, vector<16x32xf32> -> vector<16x32xf32>
    %c0_8 = arith.constant 0 : index
    %c0_9 = arith.constant 0 : index
    %8 = vector.load %arg5[%c0_8, %c0_9] : memref<1x32xf32, #tpu.memory_space<vmem>>, vector<1x32xf32>
    %9 = vector.broadcast %8 : vector<1x32xf32> to vector<16x32xf32>
    %10 = arith.addf %7, %9 : vector<16x32xf32>
    %11 = vector.shape_cast %5 : vector<16x32xf32> to vector<2x8x32xf32>
    %12 = vector.shape_cast %10 : vector<16x32xf32> to vector<2x8x32xf32>
    "tpu.trace_start"() <{level = 10 : i32, message = "bmd,bnd->bmn"}> : () -> ()
    %cst_10 = arith.constant dense<0.000000e+00> : vector<2x8x8xf32>
    %13 = tpu.matmul %11, %12, %cst_10 {dimension_numbers = #tpu.dot_dimension_numbers<[2], [2], [1], [1], [0, 0, 0, 1, 1, 1], [0], [0]>} : vector<2x8x32xf32>, vector<2x8x32xf32>, vector<2x8x8xf32> -> vector<2x8x8xf32>
    "tpu.trace_stop"() : () -> ()
    %14 = tpu.iota {dimensions = array<i32: 1>} : vector<2x8x8xi32>
    %15 = tpu.iota {dimensions = array<i32: 2>} : vector<2x8x8xi32>
    %16 = arith.cmpi eq, %14, %15 : vector<2x8x8xi32>
    %cst_11 = arith.constant 0.000000e+00 : f32
    %17 = vector.broadcast %cst_11 : f32 to vector<2x8x8xf32>
    %18 = arith.select %16, %17, %13 : vector<2x8x8xi1>, vector<2x8x8xf32>
    %cst_12 = arith.constant dense<0.000000e+00> : vector<2x8xf32>
    %19 = vector.multi_reduction <add>, %18, %cst_12 [1] : vector<2x8x8xf32> to vector<2x8xf32>
    %cst_13 = arith.constant dense<0.000000e+00> : vector<2x8xf32>
    %20 = vector.multi_reduction <add>, %18, %cst_13 [2] : vector<2x8x8xf32> to vector<2x8xf32>
    %cst_14 = arith.constant dense<0xFF800000> : vector<2xf32>
    %21 = vector.multi_reduction <maximumf>, %19, %cst_14 [1] : vector<2x8xf32> to vector<2xf32>
    %22 = vector.shape_cast %21 : vector<2xf32> to vector<2x1xf32>
    %23 = vector.broadcast %22 : vector<2x1xf32> to vector<2x8xf32>
    %24 = arith.subf %19, %23 : vector<2x8xf32>
    %25 = math.exp %24 : vector<2x8xf32>
    %cst_15 = arith.constant dense<0.000000e+00> : vector<2xf32>
    %26 = vector.multi_reduction <add>, %25, %cst_15 [1] : vector<2x8xf32> to vector<2xf32>
    %27 = vector.shape_cast %26 : vector<2xf32> to vector<2x1xf32>
    %28 = vector.broadcast %27 : vector<2x1xf32> to vector<2x8xf32>
    %29 = arith.divf %25, %28 : vector<2x8xf32>
    %c0_16 = arith.constant 0 : index
    %c0_17 = arith.constant 0 : index
    %30 = vector.load %arg7[%c0_16, %c0_17] : memref<2x8xf32, #tpu.memory_space<vmem>>, vector<2x8xf32>
    tpu.vector_store %arg7[%c0_16, %c0_17], %29 {strides = array<i32>} : memref<2x8xf32, #tpu.memory_space<vmem>>, vector<2x8xf32>,
    %c0_18 = arith.constant 0 : index
    %c0_19 = arith.constant 0 : index
    %31 = vector.load %arg6[%c0_18, %c0_19] : memref<2x8xf32, #tpu.memory_space<vmem>>, vector<2x8xf32>
    %32 = math.log %27 : vector<2x1xf32>
    %33 = arith.addf %22, %32 : vector<2x1xf32>
    %34 = arith.mulf %31, %19 : vector<2x8xf32>
    %cst_20 = arith.constant dense<0.000000e+00> : vector<2xf32>
    %35 = vector.multi_reduction <add>, %34, %cst_20 [1] : vector<2x8xf32> to vector<2xf32>
    %36 = vector.shape_cast %35 : vector<2xf32> to vector<2x1xf32>
    %37 = arith.subf %33, %36 : vector<2x1xf32>
    %cst_21 = arith.constant 0.000000e+00 : f32
    %38 = vector.broadcast %cst_21 : f32 to vector<2x8xf32>
    %39 = arith.subf %38, %20 : vector<2x8xf32>
    %cst_22 = arith.constant dense<0xFF800000> : vector<2xf32>
    %40 = vector.multi_reduction <maximumf>, %39, %cst_22 [1] : vector<2x8xf32> to vector<2xf32>
    %41 = vector.shape_cast %40 : vector<2xf32> to vector<2x1xf32>
    %42 = vector.broadcast %41 : vector<2x1xf32> to vector<2x8xf32>
    %43 = arith.subf %39, %42 : vector<2x8xf32>
    %44 = math.exp %43 : vector<2x8xf32>
    %cst_23 = arith.constant dense<0.000000e+00> : vector<2xf32>
    %45 = vector.multi_reduction <add>, %44, %cst_23 [1] : vector<2x8xf32> to vector<2xf32>
    %46 = vector.shape_cast %45 : vector<2xf32> to vector<2x1xf32>
    %47 = math.log %46 : vector<2x1xf32>
    %48 = arith.addf %41, %47 : vector<2x1xf32>
    %49 = arith.mulf %31, %39 : vector<2x8xf32>
    %cst_24 = arith.constant dense<0.000000e+00> : vector<2xf32>
    %50 = vector.multi_reduction <add>, %49, %cst_24 [1] : vector<2x8xf32> to vector<2xf32>
    %51 = vector.shape_cast %50 : vector<2xf32> to vector<2x1xf32>
    %52 = arith.subf %48, %51 : vector<2x1xf32>
    %53 = arith.addf %37, %52 : vector<2x1xf32>
    %c0_25 = arith.constant 0 : index
    %c0_26 = arith.constant 0 : index
    %54 = vector.load %arg8[%c0_25, %c0_26] : memref<2x1xf32, #tpu.memory_space<vmem>>, vector<2x1xf32>
    tpu.vector_store %arg8[%c0_25, %c0_26], %53 {strides = array<i32>} : memref<2x1xf32, #tpu.memory_space<vmem>>, vector<2x1xf32>,
    return
  }
  func.func @transform_0(%arg0: i32) -> (i32, i32) {
    %c0_i32 = arith.constant 0 : i32
    %c0_i32_0 = arith.constant 0 : i32
    return %arg0, %c0_i32 : i32, i32
  }
  func.func @transform_1(%arg0: i32) -> (i32, i32) {
    %c0_i32 = arith.constant 0 : i32
    %c0_i32_0 = arith.constant 0 : i32
    %c0_i32_1 = arith.constant 0 : i32
    return %c0_i32, %c0_i32_0 : i32, i32
  }
  func.func @transform_2(%arg0: i32) -> (i32, i32) {
    %c0_i32 = arith.constant 0 : i32
    %c0_i32_0 = arith.constant 0 : i32
    %c0_i32_1 = arith.constant 0 : i32
    return %c0_i32, %c0_i32_0 : i32, i32
  }
  func.func @transform_3(%arg0: i32) -> (i32, i32) {
    %c0_i32 = arith.constant 0 : i32
    %c0_i32_0 = arith.constant 0 : i32
    %c0_i32_1 = arith.constant 0 : i32
    return %c0_i32, %c0_i32_0 : i32, i32
  }
  func.func @transform_4(%arg0: i32) -> (i32, i32) {
    %c0_i32 = arith.constant 0 : i32
    %c0_i32_0 = arith.constant 0 : i32
    %c0_i32_1 = arith.constant 0 : i32
    return %c0_i32, %c0_i32_0 : i32, i32
  }
  func.func @transform_5(%arg0: i32) -> (i32, i32) {
    %c0_i32 = arith.constant 0 : i32
    %c0_i32_0 = arith.constant 0 : i32
    return %arg0, %c0_i32 : i32, i32
  }
  func.func @transform_6(%arg0: i32) -> (i32, i32) {
    %c0_i32 = arith.constant 0 : i32
    %c0_i32_0 = arith.constant 0 : i32
    return %arg0, %c0_i32 : i32, i32
  }
  func.func @transform_7(%arg0: i32) -> (i32, i32) {
    %c0_i32 = arith.constant 0 : i32
    %c0_i32_0 = arith.constant 0 : i32
    return %arg0, %c0_i32 : i32, i32
  }
}

</mosaic_0001>

<llo_original>
// kernel: tpu_custom_call.1
$region0: #{tpu_custom_call.1}
  #allocation0 [shape = 'u32[]', space=smem, size = 0x4, offset = 0x4, fixed_abs, tag = 'smem constant byte address 0x4 - core index']
  #allocation1 [shape = 'u32[144,128]{1,0:T(1,128)}', space=vmem, size = 0x12000, scoped, tag = 'internal scratch']
  %s0 = inlined_call_operand.hbm [shape: f32[16,32], index: 0, kind: input, shape index: {}]
  %s1 = inlined_call_operand.hbm [shape: f32[32,32], index: 1, kind: input, shape index: {}]
  %s2 = inlined_call_operand.vmem [shape: f32[1,32], index: 2, kind: input, shape index: {}]
  %s3 = inlined_call_operand.hbm [shape: f32[32,32], index: 3, kind: input, shape index: {}]
  %s4 = inlined_call_operand.vmem [shape: f32[1,32], index: 4, kind: input, shape index: {}]
  %s5 = inlined_call_operand.vmem [shape: f32[2,8], index: 5, kind: input, shape index: {}]
  %s6 = inlined_call_operand.hbm [shape: f32[2,8], index: 6, kind: output, shape index: {0}]
  %s7 = inlined_call_operand.vmem [shape: f32[2,1], index: 7, kind: output, shape index: {1}]
  %8 = xla_tuple %s6, %s7
  %s9 = sld [smem:[#allocation0]]
  $region54: #{tpu_custom_call.1} parent=0
    _
  %s11 = ssub.s32 1, %s9
  %s12 = scalar_select 0, %s11, %s9
  $region1: #{tpu_custom_call.1} parent=0
    #allocation2 [shape = 'u8[8192]{0}', space=vmem, size = 0x2000, scoped, tag = 'input window, operand 0, single buffered']
    #allocation3 [shape = 's32[1]{0}', space=sflag, size = 0x4, scoped, tag = 'scoped memory for tpu_custom_call.1']
    #allocation4 [shape = 's32[1]{0}', space=sflag, size = 0x4, scoped, tag = 'scoped memory for tpu_custom_call.1']
    #allocation5 [shape = 'u8[16384]{0}', space=vmem, size = 0x4000, scoped, tag = 'input window, operand 1, single buffered']
    #allocation6 [shape = 's32[1]{0}', space=sflag, size = 0x4, scoped, tag = 'scoped memory for tpu_custom_call.1']
    #allocation7 [shape = 'u8[16384]{0}', space=vmem, size = 0x4000, scoped, tag = 'input window, operand 3, single buffered']
    #allocation8 [shape = 'u8[1024]{0}', space=vmem, size = 0x400, scoped, tag = 'output window, operand 0, single buffered']
    %13 = vsyncpa [#allocation3], 0
    %14 = vsyncpa [#allocation6], 0
    %15 = vsyncpa [#allocation4], 0
    // Predicated region
    $region2: #{tpu_custom_call.1} parent=1 // pred_check
      _
    $region3: #{tpu_custom_call.1} parent=1 // pred_check_branch
      %17 = sbr.rel (0) target = $region5
    $region4: #{tpu_custom_call.1} parent=1 // pred_region
      %s19 = ssub.s32 256, 256
      %20 = vsyncadd [#allocation3], %s19
      %s21 = sshll.u32 [#allocation2], 4
      %s22 = int_to_ptr.vmem [resolvable:$true] %s21
      %27 = dma.hbm_to_vmem [thread:$0]  %s0, 256, %s22, [#allocation3], 128, 128, 8
    $region5: #{tpu_custom_call.1} parent=1 // pred_fallthru
      _
    // Predicated region
    $region6: #{tpu_custom_call.1} parent=1 // pred_check
      _
    $region7: #{tpu_custom_call.1} parent=1 // pred_check_branch
      %29 = sbr.rel (0) target = $region9
    $region8: #{tpu_custom_call.1} parent=1 // pred_region
      %s31 = ssub.s32 512, 512
      %32 = vsyncadd [#allocation6], %s31
      %s33 = sshll.u32 [#allocation5], 4
      %s34 = int_to_ptr.vmem [resolvable:$true] %s33
      %39 = dma.hbm_to_vmem [thread:$0]  %s1, 512, %s34, [#allocation6], 128, 128, 8
    $region9: #{tpu_custom_call.1} parent=1 // pred_fallthru
      _
    // Predicated region
    $region10: #{tpu_custom_call.1} parent=1 // pred_check
      _
    $region11: #{tpu_custom_call.1} parent=1 // pred_check_branch
      %41 = sbr.rel (0) target = $region13
    $region12: #{tpu_custom_call.1} parent=1 // pred_region
      _
    $region13: #{tpu_custom_call.1} parent=1 // pred_fallthru
      _
    // Predicated region
    $region14: #{tpu_custom_call.1} parent=1 // pred_check
      _
    $region15: #{tpu_custom_call.1} parent=1 // pred_check_branch
      %43 = sbr.rel (0) target = $region17
    $region16: #{tpu_custom_call.1} parent=1 // pred_region
      %s45 = ssub.s32 512, 512
      %46 = vsyncadd [#allocation6], %s45
      %s47 = sshll.u32 [#allocation7], 4
      %s48 = int_to_ptr.vmem [resolvable:$true] %s47
      %53 = dma.hbm_to_vmem [thread:$0]  %s3, 512, %s48, [#allocation6], 128, 128, 8
    $region17: #{tpu_custom_call.1} parent=1 // pred_fallthru
      _
    // Predicated region
    $region18: #{tpu_custom_call.1} parent=1 // pred_check
      _
    $region19: #{tpu_custom_call.1} parent=1 // pred_check_branch
      %55 = sbr.rel (0) target = $region21
    $region20: #{tpu_custom_call.1} parent=1 // pred_region
      _
    $region21: #{tpu_custom_call.1} parent=1 // pred_fallthru
      _
    // Predicated region
    $region22: #{tpu_custom_call.1} parent=1 // pred_check
      _
    $region23: #{tpu_custom_call.1} parent=1 // pred_check_branch
      %57 = sbr.rel (0) target = $region25
    $region24: #{tpu_custom_call.1} parent=1 // pred_region
      _
    $region25: #{tpu_custom_call.1} parent=1 // pred_fallthru
      _
    // Predicated region
    $region26: #{tpu_custom_call.1} parent=1 // pred_check
      _
    $region27: #{tpu_custom_call.1} parent=1 // pred_check_branch
      %59 = sbr.rel (0) target = $region29
    $region28: #{tpu_custom_call.1} parent=1 // pred_region
      %60 = dma.done [#allocation3], 256
    $region29: #{tpu_custom_call.1} parent=1 // pred_fallthru
      _
    // Predicated region
    $region30: #{tpu_custom_call.1} parent=1 // pred_check
      _
    $region31: #{tpu_custom_call.1} parent=1 // pred_check_branch
      %62 = sbr.rel (0) target = $region33
    $region32: #{tpu_custom_call.1} parent=1 // pred_region
      %63 = dma.done [#allocation6], 512
    $region33: #{tpu_custom_call.1} parent=1 // pred_fallthru
      _
    // Predicated region
    $region34: #{tpu_custom_call.1} parent=1 // pred_check
      _
    $region35: #{tpu_custom_call.1} parent=1 // pred_check_branch
      %65 = sbr.rel (0) target = $region37
    $region36: #{tpu_custom_call.1} parent=1 // pred_region
      %66 = dma.done [#allocation6], 512
    $region37: #{tpu_custom_call.1} parent=1 // pred_fallthru
      _
    %v67 = vld [vmem:[#allocation2] sm:$0xff]
    %v68 = vld [vmem:[#allocation2 + $0x8] sm:$0xff]
    %v69 = vld [vmem:[#allocation5] sm:$0xff]
    %v70 = vld [vmem:[#allocation5 + $0x8] sm:$0xff]
    %v71 = vld [vmem:[#allocation5 + $0x10] sm:$0xff]
    %v72 = vld [vmem:[#allocation5 + $0x18] sm:$0xff]
    %v73 = vld [vmem:[%s2] sm:$0x1]
    %v75 = vlaneseq
    %v76 = vshrl.u32 %v75, 7
    %v77 = vsub.s32 0, %v76
    %v78 = vrot.slane %v73, %v77
    %vm80 = vcmask 261120
    %v82 = vsel %vm80, %v67, 0
    %v85 = vsel %vm80, %v68, 0
    %v88 = vsel %vm80, %v69, 0
    %v91 = vsel %vm80, %v70, 0
    %v94 = vsel %vm80, %v71, 0
    %v97 = vsel %vm80, %v72, 0
    %99 = vmatprep.subr.mxu0 0.0
    %100 = vmatpush1.xpose.msra.mxu0 0.0
    %101 = vmatprep.subr.mxu0 0.0
    %102 = vmatpush1.xpose.msra.mxu0 0.0
    %103 = vmatprep.subr.mxu0 0.0
    %104 = vmatpush1.xpose.msra.mxu0 0.0
    %105 = vmatprep.subr.mxu0 0.0
    %106 = vmatpush1.xpose.msra.mxu0 0.0
    %107 = vmatprep.subr.mxu0 0.0
    %108 = vmatpush1.xpose.msra.mxu0 0.0
    %109 = vmatprep.subr.mxu0 0.0
    %110 = vmatpush1.xpose.msra.mxu0 0.0
    %111 = vmatprep.subr.mxu0 0.0
    %112 = vmatpush1.xpose.msra.mxu0 0.0
    %113 = vmatprep.subr.mxu0 0.0
    %114 = vmatpush1.xpose.msra.mxu0 0.0
    %115 = vmatprep.subr.mxu0 0.0
    %116 = vmatpush1.xpose.msra.mxu0 0.0
    %117 = vmatprep.subr.mxu0 0.0
    %118 = vmatpush1.xpose.msra.mxu0 0.0
    %119 = vmatprep.subr.mxu0 0.0
    %120 = vmatpush1.xpose.msra.mxu0 0.0
    %121 = vmatprep.subr.mxu0 0.0
    %122 = vmatpush1.xpose.msra.mxu0 0.0
    %123 = vmatprep.subr.mxu0 0.0
    %124 = vmatpush1.xpose.msra.mxu0 %v97
    %125 = vmatprep.subr.mxu0 0.0
    %126 = vmatpush1.xpose.msra.mxu0 %v94
    %127 = vmatprep.subr.mxu0 0.0
    %128 = vmatpush1.xpose.msra.mxu0 %v91
    %129 = vmatprep.subr.mxu0 0.0
    %130 = vmatpush1.xpose.msra.mxu0 %v88
    %131 = vmatprep.subr.mxu0 0.0
    %132 = vmatpush2.xpose.msra.mxu0 0.0
    %133 = vmatprep.subr.mxu0 0.0
    %134 = vmatpush2.xpose.msra.mxu0 0.0
    %135 = vmatprep.subr.mxu0 0.0
    %136 = vmatpush2.xpose.msra.mxu0 0.0
    %137 = vmatprep.subr.mxu0 0.0
    %138 = vmatpush2.xpose.msra.mxu0 0.0
    %139 = vmatprep.subr.mxu0 0.0
    %140 = vmatpush2.xpose.msra.mxu0 0.0
    %141 = vmatprep.subr.mxu0 0.0
    %142 = vmatpush2.xpose.msra.mxu0 0.0
    %143 = vmatprep.subr.mxu0 0.0
    %144 = vmatpush2.xpose.msra.mxu0 0.0
    %145 = vmatprep.subr.mxu0 0.0
    %146 = vmatpush2.xpose.msra.mxu0 0.0
    %147 = vmatprep.subr.mxu0 0.0
    %148 = vmatpush2.xpose.msra.mxu0 0.0
    %149 = vmatprep.subr.mxu0 0.0
    %150 = vmatpush2.xpose.msra.mxu0 0.0
    %151 = vmatprep.subr.mxu0 0.0
    %152 = vmatpush2.xpose.msra.mxu0 0.0
    %153 = vmatprep.subr.mxu0 0.0
    %154 = vmatpush2.xpose.msra.mxu0 0.0
    %155 = vmatprep.subr.mxu0 0.0
    %156 = vmatpush2.xpose.msra.mxu0 0.0
    %157 = vmatprep.subr.mxu0 0.0
    %158 = vmatpush2.xpose.msra.mxu0 0.0
    %159 = vmatprep.subr.mxu0 0.0
    %160 = vmatpush2.xpose.msra.mxu0 0.0
    %161 = vmatprep.subr.mxu0 0.0
    %162 = vmatpush2.xpose.msra.mxu0 0.0
    %163 = vmatprep.mubr.f32.mxu0 0.0
    %164 = vmatmul.mubr.f32.gmra.mxu0 %v82
    %v165 = vpop.f32.mrf.mxu0
    %v166 = vadd.f32 %v78, %v165
    %v167 = vpop.f32.mrf.mxu0
    %168 = vmatprep.mubr.f32.mxu0 0.0
    %169 = vmatmul.mubr.f32.gmra.mxu0 %v85
    %v170 = vpop.f32.mrf.mxu0
    %v171 = vadd.f32 %v78, %v170
    %v172 = vpop.f32.mrf.mxu0
    %173 = vdwg.mxu0
    %v174 = vld [vmem:[#allocation7] sm:$0xff]
    %v175 = vld [vmem:[#allocation7 + $0x8] sm:$0xff]
    %v176 = vld [vmem:[#allocation7 + $0x10] sm:$0xff]
    %v177 = vld [vmem:[#allocation7 + $0x18] sm:$0xff]
    %v178 = vld [vmem:[%s4] sm:$0x1]
    %v180 = vlaneseq
    %v181 = vshrl.u32 %v180, 7
    %v182 = vsub.s32 0, %v181
    %v183 = vrot.slane %v178, %v182
    %v186 = vsel %vm80, %v174, 0
    %v189 = vsel %vm80, %v175, 0
    %v192 = vsel %vm80, %v176, 0
    %v195 = vsel %vm80, %v177, 0
    %197 = vmatprep.subr.mxu0 0.0
    %198 = vmatpush1.xpose.msra.mxu0 0.0
    %199 = vmatprep.subr.mxu0 0.0
    %200 = vmatpush1.xpose.msra.mxu0 0.0
    %201 = vmatprep.subr.mxu0 0.0
    %202 = vmatpush1.xpose.msra.mxu0 0.0
    %203 = vmatprep.subr.mxu0 0.0
    %204 = vmatpush1.xpose.msra.mxu0 0.0
    %205 = vmatprep.subr.mxu0 0.0
    %206 = vmatpush1.xpose.msra.mxu0 0.0
    %207 = vmatprep.subr.mxu0 0.0
    %208 = vmatpush1.xpose.msra.mxu0 0.0
    %209 = vmatprep.subr.mxu0 0.0
    %210 = vmatpush1.xpose.msra.mxu0 0.0
    %211 = vmatprep.subr.mxu0 0.0
    %212 = vmatpush1.xpose.msra.mxu0 0.0
    %213 = vmatprep.subr.mxu0 0.0
    %214 = vmatpush1.xpose.msra.mxu0 0.0
    %215 = vmatprep.subr.mxu0 0.0
    %216 = vmatpush1.xpose.msra.mxu0 0.0
    %217 = vmatprep.subr.mxu0 0.0
    %218 = vmatpush1.xpose.msra.mxu0 0.0
    %219 = vmatprep.subr.mxu0 0.0
    %220 = vmatpush1.xpose.msra.mxu0 0.0
    %221 = vmatprep.subr.mxu0 0.0
    %222 = vmatpush1.xpose.msra.mxu0 %v195
    %223 = vmatprep.subr.mxu0 0.0
    %224 = vmatpush1.xpose.msra.mxu0 %v192
    %225 = vmatprep.subr.mxu0 0.0
    %226 = vmatpush1.xpose.msra.mxu0 %v189
    %227 = vmatprep.subr.mxu0 0.0
    %228 = vmatpush1.xpose.msra.mxu0 %v186
    %229 = vmatprep.subr.mxu0 0.0
    %230 = vmatpush2.xpose.msra.mxu0 0.0
    %231 = vmatprep.subr.mxu0 0.0
    %232 = vmatpush2.xpose.msra.mxu0 0.0
    %233 = vmatprep.subr.mxu0 0.0
    %234 = vmatpush2.xpose.msra.mxu0 0.0
    %235 = vmatprep.subr.mxu0 0.0
    %236 = vmatpush2.xpose.msra.mxu0 0.0
    %237 = vmatprep.subr.mxu0 0.0
    %238 = vmatpush2.xpose.msra.mxu0 0.0
    %239 = vmatprep.subr.mxu0 0.0
    %240 = vmatpush2.xpose.msra.mxu0 0.0
    %241 = vmatprep.subr.mxu0 0.0
    %242 = vmatpush2.xpose.msra.mxu0 0.0
    %243 = vmatprep.subr.mxu0 0.0
    %244 = vmatpush2.xpose.msra.mxu0 0.0
    %245 = vmatprep.subr.mxu0 0.0
    %246 = vmatpush2.xpose.msra.mxu0 0.0
    %247 = vmatprep.subr.mxu0 0.0
    %248 = vmatpush2.xpose.msra.mxu0 0.0
    %249 = vmatprep.subr.mxu0 0.0
    %250 = vmatpush2.xpose.msra.mxu0 0.0
    %251 = vmatprep.subr.mxu0 0.0
    %252 = vmatpush2.xpose.msra.mxu0 0.0
    %253 = vmatprep.subr.mxu0 0.0
    %254 = vmatpush2.xpose.msra.mxu0 0.0
    %255 = vmatprep.subr.mxu0 0.0
    %256 = vmatpush2.xpose.msra.mxu0 0.0
    %257 = vmatprep.subr.mxu0 0.0
    %258 = vmatpush2.xpose.msra.mxu0 0.0
    %259 = vmatprep.subr.mxu0 0.0
    %260 = vmatpush2.xpose.msra.mxu0 0.0
    %261 = vmatprep.mubr.f32.mxu0 0.0
    %262 = vmatmul.mubr.f32.gmra.mxu0 %v82
    %v263 = vpop.f32.mrf.mxu0
    %v264 = vadd.f32 %v183, %v263
    %v265 = vpop.f32.mrf.mxu0
    %266 = vmatprep.mubr.f32.mxu0 0.0
    %267 = vmatmul.mubr.f32.gmra.mxu0 %v85
    %v268 = vpop.f32.mrf.mxu0
    %v269 = vadd.f32 %v183, %v268
    %v270 = vpop.f32.mrf.mxu0
    %271 = vdwg.mxu0
    %v273 = vsel %vm80, %v166, 0
    %v276 = vsel %vm80, %v264, 0
    %278 = vmatprep.subr.mxu0 0.0
    %279 = vmatpush1.xpose.msra.mxu0 0.0
    %280 = vmatprep.subr.mxu0 0.0
    %281 = vmatpush1.xpose.msra.mxu0 0.0
    %282 = vmatprep.subr.mxu0 0.0
    %283 = vmatpush1.xpose.msra.mxu0 0.0
    %284 = vmatprep.subr.mxu0 0.0
    %285 = vmatpush1.xpose.msra.mxu0 0.0
    %286 = vmatprep.subr.mxu0 0.0
    %287 = vmatpush1.xpose.msra.mxu0 0.0
    %288 = vmatprep.subr.mxu0 0.0
    %289 = vmatpush1.xpose.msra.mxu0 0.0
    %290 = vmatprep.subr.mxu0 0.0
    %291 = vmatpush1.xpose.msra.mxu0 0.0
    %292 = vmatprep.subr.mxu0 0.0
    %293 = vmatpush1.xpose.msra.mxu0 0.0
    %294 = vmatprep.subr.mxu0 0.0
    %295 = vmatpush1.xpose.msra.mxu0 0.0
    %296 = vmatprep.subr.mxu0 0.0
    %297 = vmatpush1.xpose.msra.mxu0 0.0
    %298 = vmatprep.subr.mxu0 0.0
    %299 = vmatpush1.xpose.msra.mxu0 0.0
    %300 = vmatprep.subr.mxu0 0.0
    %301 = vmatpush1.xpose.msra.mxu0 0.0
    %302 = vmatprep.subr.mxu0 0.0
    %303 = vmatpush1.xpose.msra.mxu0 0.0
    %304 = vmatprep.subr.mxu0 0.0
    %305 = vmatpush1.xpose.msra.mxu0 0.0
    %306 = vmatprep.subr.mxu0 0.0
    %307 = vmatpush1.xpose.msra.mxu0 0.0
    %308 = vmatprep.subr.mxu0 0.0
    %309 = vmatpush1.xpose.msra.mxu0 %v276
    %310 = vmatprep.subr.mxu0 0.0
    %311 = vmatpush2.xpose.msra.mxu0 0.0
    %312 = vmatprep.subr.mxu0 0.0
    %313 = vmatpush2.xpose.msra.mxu0 0.0
    %314 = vmatprep.subr.mxu0 0.0
    %315 = vmatpush2.xpose.msra.mxu0 0.0
    %316 = vmatprep.subr.mxu0 0.0
    %317 = vmatpush2.xpose.msra.mxu0 0.0
    %318 = vmatprep.subr.mxu0 0.0
    %319 = vmatpush2.xpose.msra.mxu0 0.0
    %320 = vmatprep.subr.mxu0 0.0
    %321 = vmatpush2.xpose.msra.mxu0 0.0
    %322 = vmatprep.subr.mxu0 0.0
    %323 = vmatpush2.xpose.msra.mxu0 0.0
    %324 = vmatprep.subr.mxu0 0.0
    %325 = vmatpush2.xpose.msra.mxu0 0.0
    %326 = vmatprep.subr.mxu0 0.0
    %327 = vmatpush2.xpose.msra.mxu0 0.0
    %328 = vmatprep.subr.mxu0 0.0
    %329 = vmatpush2.xpose.msra.mxu0 0.0
    %330 = vmatprep.subr.mxu0 0.0
    %331 = vmatpush2.xpose.msra.mxu0 0.0
    %332 = vmatprep.subr.mxu0 0.0
    %333 = vmatpush2.xpose.msra.mxu0 0.0
    %334 = vmatprep.subr.mxu0 0.0
    %335 = vmatpush2.xpose.msra.mxu0 0.0
    %336 = vmatprep.subr.mxu0 0.0
    %337 = vmatpush2.xpose.msra.mxu0 0.0
    %338 = vmatprep.subr.mxu0 0.0
    %339 = vmatpush2.xpose.msra.mxu0 0.0
    %340 = vmatprep.subr.mxu0 0.0
    %341 = vmatpush2.xpose.msra.mxu0 0.0
    %342 = vmatprep.mubr.f32.mxu0 0.0
    %343 = vmatmul.mubr.f32.gmra.mxu0 %v273
    %v344 = vpop.f32.mrf.mxu0
    %v345 = vadd.f32 0.0, %v344
    %v346 = vpop.f32.mrf.mxu0
    %347 = vdwg.mxu0
    %v349 = vsel %vm80, %v171, 0
    %v352 = vsel %vm80, %v269, 0
    %354 = vmatprep.subr.mxu0 0.0
    %355 = vmatpush1.xpose.msra.mxu0 0.0
    %356 = vmatprep.subr.mxu0 0.0
    %357 = vmatpush1.xpose.msra.mxu0 0.0
    %358 = vmatprep.subr.mxu0 0.0
    %359 = vmatpush1.xpose.msra.mxu0 0.0
    %360 = vmatprep.subr.mxu0 0.0
    %361 = vmatpush1.xpose.msra.mxu0 0.0
    %362 = vmatprep.subr.mxu0 0.0
    %363 = vmatpush1.xpose.msra.mxu0 0.0
    %364 = vmatprep.subr.mxu0 0.0
    %365 = vmatpush1.xpose.msra.mxu0 0.0
    %366 = vmatprep.subr.mxu0 0.0
    %367 = vmatpush1.xpose.msra.mxu0 0.0
    %368 = vmatprep.subr.mxu0 0.0
    %369 = vmatpush1.xpose.msra.mxu0 0.0
    %370 = vmatprep.subr.mxu0 0.0
    %371 = vmatpush1.xpose.msra.mxu0 0.0
    %372 = vmatprep.subr.mxu0 0.0
    %373 = vmatpush1.xpose.msra.mxu0 0.0
    %374 = vmatprep.subr.mxu0 0.0
    %375 = vmatpush1.xpose.msra.mxu0 0.0
    %376 = vmatprep.subr.mxu0 0.0
    %377 = vmatpush1.xpose.msra.mxu0 0.0
    %378 = vmatprep.subr.mxu0 0.0
    %379 = vmatpush1.xpose.msra.mxu0 0.0
    %380 = vmatprep.subr.mxu0 0.0
    %381 = vmatpush1.xpose.msra.mxu0 0.0
    %382 = vmatprep.subr.mxu0 0.0
    %383 = vmatpush1.xpose.msra.mxu0 0.0
    %384 = vmatprep.subr.mxu0 0.0
    %385 = vmatpush1.xpose.msra.mxu0 %v352
    %386 = vmatprep.subr.mxu0 0.0
    %387 = vmatpush2.xpose.msra.mxu0 0.0
    %388 = vmatprep.subr.mxu0 0.0
    %389 = vmatpush2.xpose.msra.mxu0 0.0
    %390 = vmatprep.subr.mxu0 0.0
    %391 = vmatpush2.xpose.msra.mxu0 0.0
    %392 = vmatprep.subr.mxu0 0.0
    %393 = vmatpush2.xpose.msra.mxu0 0.0
    %394 = vmatprep.subr.mxu0 0.0
    %395 = vmatpush2.xpose.msra.mxu0 0.0
    %396 = vmatprep.subr.mxu0 0.0
    %397 = vmatpush2.xpose.msra.mxu0 0.0
    %398 = vmatprep.subr.mxu0 0.0
    %399 = vmatpush2.xpose.msra.mxu0 0.0
    %400 = vmatprep.subr.mxu0 0.0
    %401 = vmatpush2.xpose.msra.mxu0 0.0
    %402 = vmatprep.subr.mxu0 0.0
    %403 = vmatpush2.xpose.msra.mxu0 0.0
    %404 = vmatprep.subr.mxu0 0.0
    %405 = vmatpush2.xpose.msra.mxu0 0.0
    %406 = vmatprep.subr.mxu0 0.0
    %407 = vmatpush2.xpose.msra.mxu0 0.0
    %408 = vmatprep.subr.mxu0 0.0
    %409 = vmatpush2.xpose.msra.mxu0 0.0
    %410 = vmatprep.subr.mxu0 0.0
    %411 = vmatpush2.xpose.msra.mxu0 0.0
    %412 = vmatprep.subr.mxu0 0.0
    %413 = vmatpush2.xpose.msra.mxu0 0.0
    %414 = vmatprep.subr.mxu0 0.0
    %415 = vmatpush2.xpose.msra.mxu0 0.0
    %416 = vmatprep.subr.mxu0 0.0
    %417 = vmatpush2.xpose.msra.mxu0 0.0
    %418 = vmatprep.mubr.f32.mxu0 0.0
    %419 = vmatmul.mubr.f32.gmra.mxu0 %v349
    %v420 = vpop.f32.mrf.mxu0
    %v421 = vadd.f32 0.0, %v420
    %v422 = vpop.f32.mrf.mxu0
    %423 = vdwg.mxu0
    %v424 = vlaneseq
    %v425 = vshrl.u32 %v424, 7
    %v426 = vlaneseq
    %v427 = vand.u32 %v426, 127
    %vm428 = vcmp.eq.s32.totalorder %v425, %v427
    %v429 = vsel %vm428, 0.0, %v345
    %v430 = vsel %vm428, 0.0, %v421
    %vm431 = vcmask 64512
    %v432 = vsel %vm431, %v429, 0.0
    %v433 = vrot.slane %v432, 4
    %v434 = vadd.f32 %v432, %v433
    %v435 = vrot.slane %v434, 2
    %v436 = vadd.f32 %v434, %v435
    %v437 = vrot.slane %v436, 1
    %v438 = vadd.f32 %v436, %v437
    %v439 = vsel %vm431, %v430, 0.0
    %v440 = vrot.slane %v439, 4
    %v441 = vadd.f32 %v439, %v440
    %v442 = vrot.slane %v441, 2
    %v443 = vadd.f32 %v441, %v442
    %v444 = vrot.slane %v443, 1
    %v445 = vadd.f32 %v443, %v444
    %446 = vadd.xlane.f32.xlu0 %v432
    %v447 = vpop.xlane.xlu0 %446
    %448 = vadd.xlane.f32.xlu0 %v439
    %v449 = vpop.xlane.xlu0 %448
    %vm452 = vcmask 1041409
    %v453 = vsel %vm452, %v445, %v438
    %vm455 = vcmask 58368
    %v456 = vsel %vm455, %v453, -inf
    %457 = vmax.xlane.f32.xlu0 %v456
    %v458 = vpop.xlane.xlu0 %457
    %v460 = vrot.slane %v458, 1
    %v463 = vsub.f32 %v438, %v458
    %v464 = vsub.f32 %v445, %v460
    %v465 = vmul.f32 %v463, 1.442695
    %v466 = vpow.pop %v465
    %v467 = vmul.f32 %v464, 1.442695
    %v468 = vpow.pop %v467
    %v471 = vrot.slane %v468, 7
    %v472 = vsel %vm452, %v471, %v466
    %v474 = vsel %vm455, %v472, 0.0
    %475 = vadd.xlane.f32.xlu0 %v474
    %v476 = vpop.xlane.xlu0 %475
    %v478 = vrot.slane %v476, 1
    %v481 = vrcp.pop %v476
    %v482 = vmul.f32 %v466, %v481
    %v483 = vrcp.pop %v478
    %v484 = vmul.f32 %v468, %v483
    %v487 = vrot.slane %v484, 7
    %v488 = vsel %vm452, %v487, %v482
    %490 = vst.msk [vmem:[#allocation8] sm:$0x3] %vm455, %v488
    %v491 = vld [vmem:[%s5] sm:$0x3]
    %v492 = vlog2.pop %v476
    %v493 = vmul.f32 %v492, 0.6931472
    %v494 = vadd.f32 %v458, %v493
    %v495 = vmul.f32 %v491, %v453
    %v496 = vsel %vm455, %v495, 0.0
    %497 = vadd.xlane.f32.xlu0 %v496
    %v498 = vpop.xlane.xlu0 %497
    %v499 = vsub.f32 %v494, %v498
    %v500 = vsub.f32 0.0, %v447
    %v501 = vsub.f32 0.0, %v449
    %v504 = vlaneseq
    %v505 = vshrl.u32 %v504, 7
    %v506 = vsub.s32 %v427, %v505
    %v507 = vrot.slane %v500, %v506
    %v508 = vlaneseq
    %v509 = vshrl.u32 %v508, 7
    %v510 = vsub.s32 %v427, %v509
    %v511 = vrot.slane %v501, %v510
    %v512 = vsel %vm452, %v511, %v507
    %v514 = vsel %vm455, %v512, -inf
    %515 = vmax.xlane.f32.xlu0 %v514
    %v516 = vpop.xlane.xlu0 %515
    %v518 = vlaneseq
    %v519 = vshrl.u32 %v518, 7
    %v520 = vsub.s32 0, %v519
    %v521 = vrot.slane %v516, %v520
    %v522 = vlaneseq
    %v523 = vshrl.u32 %v522, 7
    %v524 = vsub.s32 1, %v523
    %v525 = vrot.slane %v516, %v524
    %v528 = vsub.f32 %v500, %v521
    %v529 = vsub.f32 %v501, %v525
    %v530 = vmul.f32 %v528, 1.442695
    %v531 = vpow.pop %v530
    %v532 = vmul.f32 %v529, 1.442695
    %v533 = vpow.pop %v532
    %536 = vset.pattern.permute.xlu0 0
    %537 = vperm.xlu0 %536, %v531
    %v538 = vpop.permute.xlu0 %537
    %539 = vset.pattern.permute.xlu0 0
    %540 = vperm.xlu0 %539, %v533
    %v541 = vpop.permute.xlu0 %540
    %v542 = vlaneseq
    %v543 = vshrl.u32 %v542, 7
    %v544 = vsub.s32 %v427, %v543
    %v545 = vrot.slane %v538, %v544
    %v546 = vlaneseq
    %v547 = vshrl.u32 %v546, 7
    %v548 = vsub.s32 %v427, %v547
    %v549 = vrot.slane %v541, %v548
    %v550 = vsel %vm452, %v549, %v545
    %v552 = vsel %vm455, %v550, 0.0
    %553 = vadd.xlane.f32.xlu0 %v552
    %v554 = vpop.xlane.xlu0 %553
    %v555 = vlog2.pop %v554
    %v556 = vmul.f32 %v555, 0.6931472
    %v557 = vadd.f32 %v516, %v556
    %v558 = vmul.f32 %v491, %v512
    %v559 = vsel %vm455, %v558, 0.0
    %560 = vadd.xlane.f32.xlu0 %v559
    %v561 = vpop.xlane.xlu0 %560
    %v562 = vsub.f32 %v557, %v561
    %v563 = vadd.f32 %v499, %v562
    %vm564 = vcmask 1024
    %565 = vst.msk [vmem:[%s7] sm:$0x3] %vm564, %v563
    // Predicated region
    $region38: #{tpu_custom_call.1} parent=1 // pred_check
      _
    $region39: #{tpu_custom_call.1} parent=1 // pred_check_branch
      %567 = sbr.rel (0) target = $region41
    $region40: #{tpu_custom_call.1} parent=1 // pred_region
      %s569 = ssub.s32 32, 32
      %570 = vsyncadd [#allocation4], %s569
      %s572 = sshll.u32 [#allocation8], 4
      %s573 = int_to_ptr.vmem [resolvable:$true] %s572
      %575 = dma.vmem_to_hbm [thread:$0]  %s573, 32, %s6, [#allocation4]
    $region41: #{tpu_custom_call.1} parent=1 // pred_fallthru
      _
    // Predicated region
    $region42: #{tpu_custom_call.1} parent=1 // pred_check
      _
    $region43: #{tpu_custom_call.1} parent=1 // pred_check_branch
      %577 = sbr.rel (0) target = $region45
    $region44: #{tpu_custom_call.1} parent=1 // pred_region
      _
    $region45: #{tpu_custom_call.1} parent=1 // pred_fallthru
      _
    // Predicated region
    $region46: #{tpu_custom_call.1} parent=1 // pred_check
      _
    $region47: #{tpu_custom_call.1} parent=1 // pred_check_branch
      %579 = sbr.rel (0) target = $region49
    $region48: #{tpu_custom_call.1} parent=1 // pred_region
      %580 = dma.done [#allocation4], 32
    $region49: #{tpu_custom_call.1} parent=1 // pred_fallthru
      _
    // Predicated region
    $region50: #{tpu_custom_call.1} parent=1 // pred_check
      _
    $region51: #{tpu_custom_call.1} parent=1 // pred_check_branch
      %582 = sbr.rel (0) target = $region53
    $region52: #{tpu_custom_call.1} parent=1 // pred_region
      _
    $region53: #{tpu_custom_call.1} parent=1 // pred_fallthru
      _
    %583 = vsyncpa [#allocation3], 1
    %584 = vsyncpa [#allocation6], 1
    %585 = vsyncpa [#allocation4], 1

</llo_original>
